<compile_context>
chip_gen: v6e
topology: v6e:2x2x1
jax: 0.10.0
libtpu: 0.0.40
codegen_flags: <defaults>
</compile_context>

<pallas_src>
import functools

import jax
import jax.numpy as jnp
from jax.experimental import pallas as pl
from jax.experimental.pallas import tpu as pltpu


def _cross_entropy_kernel(s_ref, label_ref, out_ref, *, n_total):
    # s_ref:     (TILE_N, C)  logits tile (native dtype), VMEM
    # label_ref: (TILE_N, 1)  int32 targets tile, VMEM
    # out_ref:   (8, 128)     f32 per-tile partial-sum block (disjoint per step)
    pid = pl.program_id(0)

    s = s_ref[...].astype(jnp.float32)                 # (TILE_N, C)
    lbl = label_ref[...]                               # (TILE_N, 1) int32
    tn, c = s.shape

    # Pass 1 over the raw f32 tile: row max + target-logit gather (fused so z
    # is never re-read as a materialized temporary for the gather).
    row_max = jnp.max(s, axis=-1, keepdims=True)       # (TILE_N, 1)
    col = jax.lax.broadcasted_iota(jnp.int32, (tn, c), 1)
    tgt = jnp.sum(jnp.where(col == lbl, s, 0.0), axis=-1, keepdims=True)

    # Pass 2: exp/sum consumes z; logsumexp in the original scale.
    z = s - row_max
    lse = jnp.log(jnp.sum(jnp.exp(z), axis=-1, keepdims=True)) + row_max
    per_row = lse - tgt                                # (TILE_N, 1)

    # Mask padded rows of the final partial tile (block padding holds
    # unspecified data; the select drops any NaN/Inf computed on it).
    rows_left = n_total - pid * tn
    row_idx = jax.lax.broadcasted_iota(jnp.int32, (tn, 1), 0)
    per_row = jnp.where(row_idx < rows_left, per_row, 0.0)

    partial = jnp.sum(per_row, keepdims=True)          # (1, 1)

    # Lane-dense, unmasked (8, 128) store; the partial sum lives at [0, 0],
    # the rest of the block is zero so the wrapper's sum stays exact.
    row_i = jax.lax.broadcasted_iota(jnp.int32, (8, 128), 0)
    lane_i = jax.lax.broadcasted_iota(jnp.int32, (8, 128), 1)
    out_ref[...] = jnp.where((row_i == 0) & (lane_i == 0), partial, 0.0)


def _vmem_capacity_bytes():
    try:
        cap = getattr(pltpu.get_tpu_info(), "vmem_capacity_bytes", None)
        if cap:
            return int(cap)
    except Exception:
        pass
    return 64 * 1024 * 1024  # conservative (v7x-class) fallback


def _round_up(x, m):
    return ((x + m - 1) // m) * m


def cross_entropy(s, label):
    """Mean cross-entropy loss. s: (N, C) float logits, label: (N,) int."""
    n, c = s.shape
    label2d = label.astype(jnp.int32).reshape(n, 1)
    itemsize = jnp.dtype(s.dtype).itemsize

    # ---- Generation-aware tile sizing -------------------------------------
    phys_vmem = _vmem_capacity_bytes()
    small_vmem = phys_vmem <= 64 * 1024 * 1024          # v7x-class: 64 MiB/TC
    logits_buf_cap = (4 if small_vmem else 8) * 1024 * 1024  # per logits buffer

    # Honest per-row VMEM footprint:
    #   2x logits tile (double buffer) + ~4 full-size f32 temporaries
    #   (f32 cast, z, exp(z), compare/select) + 2x lane-padded int32 label tile.
    bytes_per_row = 2 * c * itemsize + 4 * c * 4 + 2 * 128 * 4
    total_budget = phys_vmem // 2                        # leave compiler headroom

    # Round TILE_N to the dtype's sublane packing (f32:8, bf16:16, int8/fp8:32).
    pack = 8 * max(1, 4 // itemsize)
    rows_needed = _round_up(n, pack)
    rows_by_total = total_budget // bytes_per_row
    rows_by_logits = logits_buf_cap // max(1, c * itemsize)
    tile_n = max(pack, (min(rows_by_total, rows_by_logits) // pack) * pack)
    tile_n = int(min(tile_n, rows_needed))

    num_tiles = (n + tile_n - 1) // tile_n
    grid = (num_tiles,)

    cost = pl.CostEstimate(
        flops=5 * n * c,                  # max/sub/compare/select VPU work
        transcendentals=n * c,            # exp per logit
        bytes_accessed=n * c * itemsize + n * 4 + num_tiles * 8 * 128 * 4,
    )

    out = pl.pallas_call(
        functools.partial(_cross_entropy_kernel, n_total=n),
        out_shape=jax.ShapeDtypeStruct((num_tiles * 8, 128), jnp.float32),
        grid=grid,
        in_specs=[
            pl.BlockSpec((tile_n, c), lambda i: (i, 0)),   # logits tile
            pl.BlockSpec((tile_n, 1), lambda i: (i, 0)),   # labels tile
        ],
        out_specs=pl.BlockSpec((8, 128), lambda i: (i, 0)),  # per-tile partials
        compiler_params=pltpu.CompilerParams(
            dimension_semantics=("parallel",),             # disjoint output blocks
            vmem_limit_bytes=int(phys_vmem * 3 // 4),
        ),
        cost_estimate=cost,
    )(s, label2d)

    # Exact (pairwise) sum of per-tile partials + mean, done in the wrapper.
    return jnp.sum(out) / jnp.float32(n)


def _cross_entropy_ref(s, label):
    # Pure-JAX reference (matches torch.nn.CrossEntropyLoss(reduction="mean")).
    logp = jax.nn.log_softmax(s.astype(jnp.float32), axis=-1)
    nll = -jnp.take_along_axis(logp, label[:, None].astype(jnp.int32), axis=-1)
    return jnp.mean(nll)


if __name__ == "__main__":
    key = jax.random.PRNGKey(0)
    k1, k2 = jax.random.split(key)

    N, C = 8, 32  # small shapes: batch=8 samples, 32 classes
    s = jax.random.normal(k1, (N, C), dtype=jnp.float32)
    label = jax.random.randint(k2, (N,), 0, C, dtype=jnp.int32)

    loss = cross_entropy(s, label)
    jax.block_until_ready(loss)

    ref = _cross_entropy_ref(s, label)
    assert jnp.allclose(loss, ref, rtol=1e-5, atol=1e-5), (loss, ref)

    print("KERNEL_OK")
</pallas_src>

<mosaic_0001>
module attributes {stable_mosaic.version = 11 : i64} {
  func.func @_cross_entropy_kernel(%arg0: i32, %arg1: memref<8x32xf32, #tpu.memory_space<vmem>>, %arg2: memref<8x1xi32, #tpu.memory_space<vmem>>, %arg3: memref<8x128xf32, #tpu.memory_space<vmem>>) attributes {dimension_semantics = [#tpu.dimension_semantics<parallel>], iteration_bounds = array<i64: 1>, scalar_prefetch = 0 : i64, scratch_operands = 0 : i64, tpu.core_type = #tpu.core_type<tc>, window_params = [{transform_indices = @transform_0, window_bounds = array<i64: 8, 32>}, {transform_indices = @transform_1, window_bounds = array<i64: 8, 1>}, {transform_indices = @transform_2, window_bounds = array<i64: 8, 128>}]} {
    %c0 = arith.constant 0 : index
    %c0_0 = arith.constant 0 : index
    %0 = vector.load %arg1[%c0, %c0_0] : memref<8x32xf32, #tpu.memory_space<vmem>>, vector<8x32xf32>
    %c0_1 = arith.constant 0 : index
    %c0_2 = arith.constant 0 : index
    %1 = vector.load %arg2[%c0_1, %c0_2] : memref<8x1xi32, #tpu.memory_space<vmem>>, vector<8x1xi32>
    %cst = arith.constant dense<0xFF800000> : vector<8xf32>
    %2 = vector.multi_reduction <maximumf>, %0, %cst [1] : vector<8x32xf32> to vector<8xf32>
    %3 = vector.shape_cast %2 : vector<8xf32> to vector<8x1xf32>
    %4 = tpu.iota {dimensions = array<i32: 1>} : vector<8x32xi32>
    %5 = vector.broadcast %1 : vector<8x1xi32> to vector<8x32xi32>
    %6 = arith.cmpi eq, %4, %5 : vector<8x32xi32>
    %cst_3 = arith.constant 0.000000e+00 : f32
    %7 = vector.broadcast %cst_3 : f32 to vector<8x32xf32>
    %8 = arith.select %6, %0, %7 : vector<8x32xi1>, vector<8x32xf32>
    %cst_4 = arith.constant dense<0.000000e+00> : vector<8xf32>
    %9 = vector.multi_reduction <add>, %8, %cst_4 [1] : vector<8x32xf32> to vector<8xf32>
    %10 = vector.shape_cast %9 : vector<8xf32> to vector<8x1xf32>
    %11 = vector.broadcast %3 : vector<8x1xf32> to vector<8x32xf32>
    %12 = arith.subf %0, %11 : vector<8x32xf32>
    %13 = math.exp %12 : vector<8x32xf32>
    %cst_5 = arith.constant dense<0.000000e+00> : vector<8xf32>
    %14 = vector.multi_reduction <add>, %13, %cst_5 [1] : vector<8x32xf32> to vector<8xf32>
    %15 = vector.shape_cast %14 : vector<8xf32> to vector<8x1xf32>
    %16 = math.log %15 : vector<8x1xf32>
    %17 = arith.addf %16, %3 : vector<8x1xf32>
    %18 = arith.subf %17, %10 : vector<8x1xf32>
    %c8_i32 = arith.constant 8 : i32
    %19 = arith.muli %arg0, %c8_i32 : i32
    %c8_i32_6 = arith.constant 8 : i32
    %20 = arith.subi %c8_i32_6, %19 : i32
    %21 = tpu.iota {dimensions = array<i32: 0>} : vector<8x1xi32>
    %22 = vector.broadcast %20 : i32 to vector<8x1xi32>
    %23 = arith.cmpi slt, %21, %22 : vector<8x1xi32>
    %cst_7 = arith.constant 0.000000e+00 : f32
    %24 = vector.broadcast %cst_7 : f32 to vector<8x1xf32>
    %25 = arith.select %23, %18, %24 : vector<8x1xi1>, vector<8x1xf32>
    %26 = vector.shape_cast %25 : vector<8x1xf32> to vector<1x8x1xf32>
    %cst_8 = arith.constant dense<0.000000e+00> : vector<1xf32>
    %27 = vector.multi_reduction <add>, %26, %cst_8 [1, 2] : vector<1x8x1xf32> to vector<1xf32>
    %28 = vector.shape_cast %27 : vector<1xf32> to vector<1x1x1xf32>
    %29 = vector.extract %28[0, 0, 0] : f32 from vector<1x1x1xf32>
    %30 = vector.broadcast %29 : f32 to vector<1x1xf32>
    %31 = tpu.iota {dimensions = array<i32: 0>} : vector<8x128xi32>
    %32 = tpu.iota {dimensions = array<i32: 1>} : vector<8x128xi32>
    %c0_i32 = arith.constant 0 : i32
    %33 = vector.broadcast %c0_i32 : i32 to vector<8x128xi32>
    %34 = arith.cmpi eq, %31, %33 : vector<8x128xi32>
    %c0_i32_9 = arith.constant 0 : i32
    %35 = vector.broadcast %c0_i32_9 : i32 to vector<8x128xi32>
    %36 = arith.cmpi eq, %32, %35 : vector<8x128xi32>
    %37 = arith.andi %34, %36 : vector<8x128xi1>
    %cst_10 = arith.constant 0.000000e+00 : f32
    %38 = vector.shape_cast %30 : vector<1x1xf32> to vector<1x1xf32>
    %39 = vector.broadcast %38 : vector<1x1xf32> to vector<8x128xf32>
    %40 = vector.broadcast %cst_10 : f32 to vector<8x128xf32>
    %41 = arith.select %37, %39, %40 : vector<8x128xi1>, vector<8x128xf32>
    %c0_11 = arith.constant 0 : index
    %c0_12 = arith.constant 0 : index
    %42 = vector.load %arg3[%c0_11, %c0_12] : memref<8x128xf32, #tpu.memory_space<vmem>>, vector<8x128xf32>
    tpu.vector_store %arg3[%c0_11, %c0_12], %41 {strides = array<i32>} : memref<8x128xf32, #tpu.memory_space<vmem>>, vector<8x128xf32>,
    return
  }
  func.func @transform_0(%arg0: i32) -> (i32, i32) {
    %c0_i32 = arith.constant 0 : i32
    %c0_i32_0 = arith.constant 0 : i32
    return %arg0, %c0_i32 : i32, i32
  }
  func.func @transform_1(%arg0: i32) -> (i32, i32) {
    %c0_i32 = arith.constant 0 : i32
    %c0_i32_0 = arith.constant 0 : i32
    return %arg0, %c0_i32 : i32, i32
  }
  func.func @transform_2(%arg0: i32) -> (i32, i32) {
    %c0_i32 = arith.constant 0 : i32
    %c0_i32_0 = arith.constant 0 : i32
    return %arg0, %c0_i32 : i32, i32
  }
}

</mosaic_0001>

<llo_original>
// kernel: tpu_custom_call.1
$region0: #{tpu_custom_call.1}
  #allocation0 [shape = 'u32[]', space=smem, size = 0x4, offset = 0x4, fixed_abs, tag = 'smem constant byte address 0x4 - core index']
  #allocation1 [shape = 'u32[144,128]{1,0:T(1,128)}', space=vmem, size = 0x12000, scoped, tag = 'internal scratch']
  %s0 = inlined_call_operand.vmem [shape: f32[8,32], index: 0, kind: input, shape index: {}]
  %s1 = inlined_call_operand.vmem [shape: s32[8,1], index: 1, kind: input, shape index: {}]
  %s2 = inlined_call_operand.hbm [shape: f32[8,128], index: 2, kind: output, shape index: {}]
  %s3 = sld [smem:[#allocation0]]
  $region18: #{tpu_custom_call.1} parent=0
    _
  %s5 = ssub.s32 1, %s3
  %s6 = scalar_select 0, %s5, %s3
  $region1: #{tpu_custom_call.1} parent=0
    #allocation2 [shape = 'u8[4096]{0}', space=vmem, size = 0x1000, scoped, tag = 'output window, operand 0, single buffered']
    #allocation3 [shape = 's32[1]{0}', space=sflag, size = 0x4, scoped, tag = 'scoped memory for tpu_custom_call.1']
    %7 = vsyncpa [#allocation3], 0
    // Predicated region
    $region2: #{tpu_custom_call.1} parent=1 // pred_check
      _
    $region3: #{tpu_custom_call.1} parent=1 // pred_check_branch
      %9 = sbr.rel (0) target = $region5
    $region4: #{tpu_custom_call.1} parent=1 // pred_region
      _
    $region5: #{tpu_custom_call.1} parent=1 // pred_fallthru
      _
    // Predicated region
    $region6: #{tpu_custom_call.1} parent=1 // pred_check
      _
    $region7: #{tpu_custom_call.1} parent=1 // pred_check_branch
      %11 = sbr.rel (0) target = $region9
    $region8: #{tpu_custom_call.1} parent=1 // pred_region
      _
    $region9: #{tpu_custom_call.1} parent=1 // pred_fallthru
      _
    %v12 = vld [vmem:[%s0] sm:$0xff]
    %v13 = vld [vmem:[%s1] sm:$0xff]
    %vm14 = vcmask 261120
    %v15 = vsel %vm14, %v12, -inf
    %16 = vmax.xlane.f32.xlu0 %v15
    %v17 = vpop.xlane.xlu0 %16
    %v18 = vlaneseq
    %v19 = vand.u32 %v18, 127
    %20 = vset.pattern.permute.xlu0 0
    %21 = vperm.xlu0 %20, %v13
    %v22 = vpop.permute.xlu0 %21
    %vm23 = vcmp.eq.s32.totalorder %v19, %v22
    %v24 = vsel %vm23, %v12, 0.0
    %v25 = vsel %vm14, %v24, 0.0
    %26 = vadd.xlane.f32.xlu0 %v25
    %v27 = vpop.xlane.xlu0 %26
    %v28 = vsub.f32 %v12, %v17
    %v29 = vmul.f32 %v28, 1.442695
    %v30 = vpow.pop %v29
    %v31 = vsel %vm14, %v30, 0.0
    %32 = vadd.xlane.f32.xlu0 %v31
    %v33 = vpop.xlane.xlu0 %32
    %v34 = vlog2.pop %v33
    %v35 = vmul.f32 %v34, 0.6931472
    %v36 = vadd.f32 %v35, %v17
    %v37 = vsub.f32 %v36, %v27
    %s38 = smul.u32 0, 8
    %s39 = ssub.s32 8, %s38
    %v40 = vlaneseq
    %v41 = vshrl.u32 %v40, 7
    %v42 = vstv %s39
    %vm43 = vcmp.lt.s32.totalorder %v41, %v42
    %v44 = vsel %vm43, %v37, 0.0
    %vm45 = vcmask 7168
    %v46 = vsel %vm45, %v44, 0.0
    %47 = vadd.xlane.f32.xlu0 %v46
    %v48 = vpop.xlane.xlu0 %47
    %v49 = vrot.slane %v48, 4
    %v50 = vadd.f32 %v48, %v49
    %v51 = vrot.slane %v50, 2
    %v52 = vadd.f32 %v50, %v51
    %v53 = vrot.slane %v52, 1
    %v54 = vadd.f32 %v52, %v53
    %s55 = vtos %v54
    %vm56 = vcmp.eq.s32.totalorder %v41, 0
    %vm57 = vcmp.eq.s32.totalorder %v19, 0
    %vm58 = vmand %vm56, %vm57
    %v59 = vstv %s55
    %v60 = vsel %vm58, %v59, 0.0
    %61 = vst [vmem:[#allocation2] sm:$0xff] %v60
    // Predicated region
    $region10: #{tpu_custom_call.1} parent=1 // pred_check
      _
    $region11: #{tpu_custom_call.1} parent=1 // pred_check_branch
      %63 = sbr.rel (0) target = $region13
    $region12: #{tpu_custom_call.1} parent=1 // pred_region
      %s65 = ssub.s32 128, 128
      %66 = vsyncadd [#allocation3], %s65
      %s68 = sshll.u32 [#allocation2], 4
      %s69 = int_to_ptr.vmem [resolvable:$true] %s68
      %71 = dma.vmem_to_hbm [thread:$0]  %s69, 128, %s2, [#allocation3]
    $region13: #{tpu_custom_call.1} parent=1 // pred_fallthru
      _
    // Predicated region
    $region14: #{tpu_custom_call.1} parent=1 // pred_check
      _
    $region15: #{tpu_custom_call.1} parent=1 // pred_check_branch
      %73 = sbr.rel (0) target = $region17
    $region16: #{tpu_custom_call.1} parent=1 // pred_region
      %74 = dma.done [#allocation3], 128
    $region17: #{tpu_custom_call.1} parent=1 // pred_fallthru
      _
    %75 = vsyncpa [#allocation3], 1

</llo_original>
